<compile_context>
chip_gen: v5e
topology: v5e:2x2
jax: 0.10.0
libtpu: 0.0.40
codegen_flags: <defaults>
</compile_context>

<pallas_src>
import functools

import numpy as np

import jax
import jax.numpy as jnp
from jax.experimental import pallas as pl
from jax.experimental.pallas import tpu as pltpu


def build_matryoshka_dims(matryoshka_dims, matryoshka_weights=None):
    """Mirror of MatryoshkaLoss.__init__ dim/weight construction."""
    if isinstance(matryoshka_dims, int):
        if matryoshka_weights:
            raise ValueError(
                "matryoshka_weights should not be set if matryoshka_dims is a "
                "single integer")
        dims = [matryoshka_dims]
        min_dim = 16
        d = matryoshka_dims
        while d >= min_dim:
            d //= 2
            dims.append(d)
    else:
        dims = list(matryoshka_dims)
    if matryoshka_weights is None:
        matryoshka_weights = [1.0] * len(dims)
    return tuple(int(d) for d in dims), tuple(float(w) for w in matryoshka_weights)


def _round_up(a, m):
    return (a + m - 1) // m * m


def _matryoshka_mse_kernel(scale_ref, x_ref, y_ref, out_ref, *,
                           TB, TH, B, H, need_row_mask, need_col_mask):
    """One (TB, TH) tile per grid step; out block is resident across the column axis."""
    i = pl.program_id(0)
    j = pl.program_id(1)

    @pl.when(j == 0)
    def _():
        out_ref[...] = jnp.zeros_like(out_ref)

    diff = x_ref[...].astype(jnp.float32) - y_ref[...].astype(jnp.float32)

    # Edge blocks overhang the (unpadded) inputs: explicitly zero out-of-bounds
    # lanes/sublanes BEFORE any multiply (do not rely on scale==0 * garbage).
    if need_row_mask or need_col_mask:
        valid = None
        if need_row_mask:
            rows = i * TB + jax.lax.broadcasted_iota(jnp.int32, (TB, TH), 0)
            valid = rows < B
        if need_col_mask:
            cols = j * TH + jax.lax.broadcasted_iota(jnp.int32, (TB, TH), 1)
            cmask = cols < H
            valid = cmask if valid is None else (valid & cmask)
        diff = jnp.where(valid, diff, 0.0)

    # scale_ref is (1, TH); it already folds weights, 1/(B*d) normalizers and
    # the matryoshka prefix masks.
    contrib = diff * diff * scale_ref[...]

    # Per-lane partial accumulation into the resident output block.
    if TB % 8 == 0:
        part = jnp.sum(contrib.reshape(TB // 8, 8, TH), axis=0)        # (8, TH)
    else:  # only possible for a single full-batch block (n_row == 1)
        part = jnp.sum(contrib, axis=0, keepdims=True)                 # (1, TH)
    out_ref[...] += part


@functools.partial(
    jax.jit,
    static_argnames=("dims", "weights", "max_tile_cols",
                     "target_block_bytes", "vmem_limit_bytes"))
def matryoshka_mse_loss(x, y, *, dims, weights,
                        max_tile_cols=2048,
                        target_block_bytes=8 * 1024 * 1024,
                        vmem_limit_bytes=48 * 1024 * 1024):
    """Weighted sum over matryoshka dims of MSE(x[:, :d], y[:, :d])."""
    assert x.shape == y.shape and x.ndim == 2
    if max_tile_cols <= 0 or max_tile_cols % 128 != 0:
        raise ValueError("max_tile_cols must be a positive multiple of 128")

    B, H = x.shape
    itemsize = jnp.dtype(x.dtype).itemsize

    # ---- column (hidden) tiling: only columns that can contribute ----
    H_eff = max(1, min(H, max(dims)))            # columns with nonzero scale
    th_cand = min(max_tile_cols, _round_up(H_eff, 128))
    if th_cand >= H:
        TH, n_col = H, 1                         # full hidden dim in one block
    else:
        TH = th_cand                             # multiple of 128, < H
        n_col = -(-H_eff // TH)
    Hp_used = n_col * TH                         # columns actually streamed
    need_col_mask = Hp_used > H                  # last col block overhangs array

    # ---- row (batch) tiling: ~target_block_bytes per input block ----
    s = {1: 32, 2: 16}.get(itemsize, 8)          # dtype-aware sublane rounding
    tb = max(s, (target_block_bytes // (TH * itemsize)) // s * s)
    if tb >= B:
        TB, n_row = B, 1                         # whole batch per block (full dim)
    else:
        TB, n_row = tb, -(-B // tb)
    need_row_mask = (n_row * TB != B)            # last row block overhangs array
    out_rows = 8 if TB % 8 == 0 else 1

    # Host-side per-column cumulative weight vector (zero beyond real columns).
    scale_np = np.zeros((Hp_used,), np.float32)
    for d, w in zip(dims, weights):
        de = min(int(d), H)
        if de > 0:
            scale_np[:de] += float(w) / float(B * de)
    scale = jnp.asarray(scale_np.reshape(1, Hp_used))

    kernel = functools.partial(
        _matryoshka_mse_kernel,
        TB=TB, TH=TH, B=B, H=H,
        need_row_mask=need_row_mask, need_col_mask=need_col_mask)

    cost = pl.CostEstimate(
        flops=int(4 * n_row * TB * Hp_used),
        transcendentals=0,
        bytes_accessed=int(2 * B * min(H, Hp_used) * itemsize
                           + (Hp_used + n_row * out_rows * TH) * 4))

    out = pl.pallas_call(
        kernel,
        out_shape=jax.ShapeDtypeStruct((n_row * out_rows, TH), jnp.float32),
        grid=(n_row, n_col),
        in_specs=[
            pl.BlockSpec((1, TH), lambda i, j: (0, j)),      # scale (tiny)
            pl.BlockSpec((TB, TH), lambda i, j: (i, j)),     # x
            pl.BlockSpec((TB, TH), lambda i, j: (i, j)),     # y
        ],
        out_specs=pl.BlockSpec((out_rows, TH), lambda i, j: (i, 0)),
        compiler_params=pltpu.CompilerParams(
            dimension_semantics=("parallel", "arbitrary"),
            vmem_limit_bytes=vmem_limit_bytes),
        cost_estimate=cost,
    )(scale, x, y)

    # Tiny final reduction over per-row / per-lane partials.
    return jnp.sum(out)


def _reference(x, y, dims, weights):
    loss = 0.0
    for d, w in zip(dims, weights):
        loss = loss + w * jnp.mean((x[:, :d] - y[:, :d]) ** 2)
    return loss


def _check(x, y, dims, weights, **kw):
    loss = jax.block_until_ready(
        matryoshka_mse_loss(x, y, dims=dims, weights=weights, **kw))
    ref = _reference(x.astype(jnp.float32), y.astype(jnp.float32), dims, weights)
    assert jnp.allclose(loss, ref, rtol=1e-4, atol=1e-5), (loss, ref)


if __name__ == "__main__":
    key = jax.random.PRNGKey(0)
    ks = jax.random.split(key, 10)

    # 1) Small shape matching the module: batch=8, hidden=32, int dims -> (32,16,8).
    B, H = 8, 32
    x = jax.random.normal(ks[0], (B, H), dtype=jnp.float32)
    y = jax.random.normal(ks[1], (B, H), dtype=jnp.float32)
    dims, weights = build_matryoshka_dims(H)
    _check(x, y, dims, weights)

    # 2) Tiled grid path (2x2 grid, accumulation across the column axis).
    x2 = jax.random.normal(ks[2], (128, 512), dtype=jnp.float32)
    y2 = jax.random.normal(ks[3], (128, 512), dtype=jnp.float32)
    _check(x2, y2, (512, 256, 128, 64, 32, 16), (1.0, 0.5, 0.5, 0.25, 0.25, 0.125),
           max_tile_cols=256, target_block_bytes=64 * 1024)

    # 3) Ragged rows AND ragged columns (no input padding; in-kernel iota masks).
    x3 = jax.random.normal(ks[4], (100, 300), dtype=jnp.float32)
    y3 = jax.random.normal(ks[5], (100, 300), dtype=jnp.float32)
    _check(x3, y3, (300, 150), (1.0, 0.7),
           max_tile_cols=128, target_block_bytes=32 * 1024)

    # 4) Hidden dim larger than max matryoshka dim: columns >= 128 are never DMA'd.
    x4 = jax.random.normal(ks[6], (64, 512), dtype=jnp.float32)
    y4 = jax.random.normal(ks[7], (64, 512), dtype=jnp.float32)
    _check(x4, y4, (128, 64, 32, 16), (1.0, 1.0, 1.0, 1.0))

    # 5) bf16 inputs + odd batch size (full-batch block, per-lane accumulator).
    x5 = jax.random.normal(ks[8], (5, 32), dtype=jnp.bfloat16)
    y5 = jax.random.normal(ks[9], (5, 32), dtype=jnp.bfloat16)
    dims5, weights5 = build_matryoshka_dims(32)
    _check(x5, y5, dims5, weights5)

    print("KERNEL_OK")
</pallas_src>

<mosaic_0001>
module attributes {stable_mosaic.version = 11 : i64} {
  func.func @_matryoshka_mse_kernel(%arg0: i32, %arg1: i32, %arg2: memref<1x32xf32, #tpu.memory_space<vmem>>, %arg3: memref<8x32xf32, #tpu.memory_space<vmem>>, %arg4: memref<8x32xf32, #tpu.memory_space<vmem>>, %arg5: memref<8x32xf32, #tpu.memory_space<vmem>>) attributes {dimension_semantics = [#tpu.dimension_semantics<parallel>, #tpu.dimension_semantics<arbitrary>], iteration_bounds = array<i64: 1, 1>, scalar_prefetch = 0 : i64, scratch_operands = 0 : i64, tpu.core_type = #tpu.core_type<tc>, window_params = [{transform_indices = @transform_0, window_bounds = array<i64: 1, 32>}, {transform_indices = @transform_1, window_bounds = array<i64: 8, 32>}, {transform_indices = @transform_2, window_bounds = array<i64: 8, 32>}, {transform_indices = @transform_3, window_bounds = array<i64: 8, 32>}]} {
    %c0_i32 = arith.constant 0 : i32
    %0 = arith.cmpi eq, %arg1, %c0_i32 : i32
    %1 = arith.extui %0 : i1 to i32
    %c0_i32_0 = arith.constant 0 : i32
    %2 = arith.cmpi ne, %1, %c0_i32_0 : i32
    scf.if %2 {
      %cst_10 = arith.constant 0.000000e+00 : f32
      %15 = vector.broadcast %cst_10 : f32 to vector<8x32xf32>
      %c0_11 = arith.constant 0 : index
      %c0_12 = arith.constant 0 : index
      %16 = vector.load %arg5[%c0_11, %c0_12] : memref<8x32xf32, #tpu.memory_space<vmem>>, vector<8x32xf32>
      tpu.vector_store %arg5[%c0_11, %c0_12], %15 {strides = array<i32>} : memref<8x32xf32, #tpu.memory_space<vmem>>, vector<8x32xf32>,
    } else {
    }
    %c0 = arith.constant 0 : index
    %c0_1 = arith.constant 0 : index
    %3 = vector.load %arg3[%c0, %c0_1] : memref<8x32xf32, #tpu.memory_space<vmem>>, vector<8x32xf32>
    %c0_2 = arith.constant 0 : index
    %c0_3 = arith.constant 0 : index
    %4 = vector.load %arg4[%c0_2, %c0_3] : memref<8x32xf32, #tpu.memory_space<vmem>>, vector<8x32xf32>
    %5 = arith.subf %3, %4 : vector<8x32xf32>
    %6 = arith.mulf %5, %5 : vector<8x32xf32>
    %c0_4 = arith.constant 0 : index
    %c0_5 = arith.constant 0 : index
    %7 = vector.load %arg2[%c0_4, %c0_5] : memref<1x32xf32, #tpu.memory_space<vmem>>, vector<1x32xf32>
    %8 = vector.broadcast %7 : vector<1x32xf32> to vector<8x32xf32>
    %9 = arith.mulf %6, %8 : vector<8x32xf32>
    %10 = vector.shape_cast %9 : vector<8x32xf32> to vector<1x8x32xf32>
    %cst = arith.constant dense<0.000000e+00> : vector<8x32xf32>
    %11 = vector.multi_reduction <add>, %10, %cst [0] : vector<1x8x32xf32> to vector<8x32xf32>
    %c0_6 = arith.constant 0 : index
    %c0_7 = arith.constant 0 : index
    %12 = vector.load %arg5[%c0_6, %c0_7] : memref<8x32xf32, #tpu.memory_space<vmem>>, vector<8x32xf32>
    %13 = arith.addf %12, %11 : vector<8x32xf32>
    %c0_8 = arith.constant 0 : index
    %c0_9 = arith.constant 0 : index
    %14 = vector.load %arg5[%c0_8, %c0_9] : memref<8x32xf32, #tpu.memory_space<vmem>>, vector<8x32xf32>
    tpu.vector_store %arg5[%c0_8, %c0_9], %13 {strides = array<i32>} : memref<8x32xf32, #tpu.memory_space<vmem>>, vector<8x32xf32>,
    return
  }
  func.func @transform_0(%arg0: i32, %arg1: i32) -> (i32, i32) {
    %c0_i32 = arith.constant 0 : i32
    %c0_i32_0 = arith.constant 0 : i32
    return %c0_i32, %arg1 : i32, i32
  }
  func.func @transform_1(%arg0: i32, %arg1: i32) -> (i32, i32) {
    %c0_i32 = arith.constant 0 : i32
    return %arg0, %arg1 : i32, i32
  }
  func.func @transform_2(%arg0: i32, %arg1: i32) -> (i32, i32) {
    %c0_i32 = arith.constant 0 : i32
    return %arg0, %arg1 : i32, i32
  }
  func.func @transform_3(%arg0: i32, %arg1: i32) -> (i32, i32) {
    %c0_i32 = arith.constant 0 : i32
    %c0_i32_0 = arith.constant 0 : i32
    return %arg0, %c0_i32 : i32, i32
  }
}

</mosaic_0001>

<llo_original>
// kernel: matryoshka_mse_loss.1
$region0: #{matryoshka_mse_loss.1}
  #allocation0 [shape = 'u32[]', space=smem, size = 0x4, offset = 0x4, fixed_abs, tag = 'smem constant byte address 0x4 - core index']
  #allocation1 [shape = 'u32[72,128]{1,0:T(1,128)}', space=vmem, size = 0x9000, scoped, tag = 'internal scratch']
  %s0 = inlined_call_operand.vmem [shape: f32[1,32], index: 0, kind: input, shape index: {}]
  %s1 = inlined_call_operand.hbm [shape: f32[8,32], index: 1, kind: input, shape index: {}]
  %s2 = inlined_call_operand.hbm [shape: f32[8,32], index: 2, kind: input, shape index: {}]
  %s3 = inlined_call_operand.vmem [shape: f32[8,32], index: 3, kind: output, shape index: {}]
  %s4 = sld [smem:[#allocation0]]
  $region34: #{matryoshka_mse_loss.1} parent=0
    _
  %s6 = ssub.s32 1, %s4
  %s7 = scalar_select 0, %s6, %s4
  $region1: #{matryoshka_mse_loss.1} parent=0
    #allocation2 [shape = 'u8[4096]{0}', space=vmem, size = 0x1000, scoped, tag = 'input window, operand 1, single buffered']
    #allocation3 [shape = 's32[1]{0}', space=sflag, size = 0x4, scoped, tag = 'scoped memory for matryoshka_mse_loss.1']
    #allocation4 [shape = 'u8[4096]{0}', space=vmem, size = 0x1000, scoped, tag = 'input window, operand 2, single buffered']
    #allocation5 [shape = 's32[1]{0}', space=sflag, size = 0x4, scoped, tag = 'scoped memory for matryoshka_mse_loss.1']
    %8 = vsyncpa [#allocation3], 0
    %9 = vsyncpa [#allocation5], 0
    // Predicated region
    $region2: #{matryoshka_mse_loss.1} parent=1 // pred_check
      _
    $region3: #{matryoshka_mse_loss.1} parent=1 // pred_check_branch
      %11 = sbr.rel (0) target = $region5
    $region4: #{matryoshka_mse_loss.1} parent=1 // pred_region
      _
    $region5: #{matryoshka_mse_loss.1} parent=1 // pred_fallthru
      _
    // Predicated region
    $region6: #{matryoshka_mse_loss.1} parent=1 // pred_check
      _
    $region7: #{matryoshka_mse_loss.1} parent=1 // pred_check_branch
      %13 = sbr.rel (0) target = $region9
    $region8: #{matryoshka_mse_loss.1} parent=1 // pred_region
      %15 = vsyncadd [#allocation3], 0
      %s17 = sshll.u32 %s1, 4
      %s18 = int_to_ptr.hbm [resolvable:$true] %s17
      %s19 = sshll.u32 [#allocation2], 4
      %s20 = int_to_ptr.vmem [resolvable:$true] %s19
      %22 = dma.hbm_to_vmem [thread:$0]  %s18, 128, %s20, [#allocation3]
    $region9: #{matryoshka_mse_loss.1} parent=1 // pred_fallthru
      _
    // Predicated region
    $region10: #{matryoshka_mse_loss.1} parent=1 // pred_check
      _
    $region11: #{matryoshka_mse_loss.1} parent=1 // pred_check_branch
      %24 = sbr.rel (0) target = $region13
    $region12: #{matryoshka_mse_loss.1} parent=1 // pred_region
      %26 = vsyncadd [#allocation5], 0
      %s28 = sshll.u32 %s2, 4
      %s29 = int_to_ptr.hbm [resolvable:$true] %s28
      %s30 = sshll.u32 [#allocation4], 4
      %s31 = int_to_ptr.vmem [resolvable:$true] %s30
      %33 = dma.hbm_to_vmem [thread:$0]  %s29, 128, %s31, [#allocation5]
    $region13: #{matryoshka_mse_loss.1} parent=1 // pred_fallthru
      _
    // Predicated region
    $region14: #{matryoshka_mse_loss.1} parent=1 // pred_check
      _
    $region15: #{matryoshka_mse_loss.1} parent=1 // pred_check_branch
      %35 = sbr.rel (0) target = $region17
    $region16: #{matryoshka_mse_loss.1} parent=1 // pred_region
      %37 = dma.done [#allocation3], 128
    $region17: #{matryoshka_mse_loss.1} parent=1 // pred_fallthru
      _
    // Predicated region
    $region18: #{matryoshka_mse_loss.1} parent=1 // pred_check
      _
    $region19: #{matryoshka_mse_loss.1} parent=1 // pred_check_branch
      %39 = sbr.rel (0) target = $region21
    $region20: #{matryoshka_mse_loss.1} parent=1 // pred_region
      %41 = dma.done [#allocation5], 128
    $region21: #{matryoshka_mse_loss.1} parent=1 // pred_fallthru
      _
    %p42 = scmp.eq.s32.totalorder 0, 0
    // Predicated region
    $region22: #{matryoshka_mse_loss.1} parent=1 // pred_check
      %p43 = pneg %p42
    $region23: #{matryoshka_mse_loss.1} parent=1 // pred_check_branch
      %45 = sbr.rel (%p43) target = $region25
    $region24: #{matryoshka_mse_loss.1} parent=1 // pred_region
      %vm46 = vcmask 261120
      %47 = vst.msk [vmem:[%s3] sm:$0xff] %vm46, 0.0
    $region25: #{matryoshka_mse_loss.1} parent=1 // pred_fallthru
      _
    %v48 = vld [vmem:[#allocation2] sm:$0xff]
    %v49 = vld [vmem:[#allocation4] sm:$0xff]
    %v50 = vsub.f32 %v48, %v49
    %v51 = vmul.f32 %v50, %v50
    %v52 = vld [vmem:[%s0] sm:$0x1]
    %v54 = vperm.slane %v52, 0
    %v56 = vmul.f32 %v51, %v54
    %v57 = vadd.f32 %v56, 0.0
    %v58 = vld [vmem:[%s3] sm:$0xff]
    %v59 = vadd.f32 %v58, %v57
    %vm60 = vcmask 261120
    %61 = vst.msk [vmem:[%s3] sm:$0xff] %vm60, %v59
    // Predicated region
    $region26: #{matryoshka_mse_loss.1} parent=1 // pred_check
      _
    $region27: #{matryoshka_mse_loss.1} parent=1 // pred_check_branch
      %63 = sbr.rel (0) target = $region29
    $region28: #{matryoshka_mse_loss.1} parent=1 // pred_region
      _
    $region29: #{matryoshka_mse_loss.1} parent=1 // pred_fallthru
      _
    // Predicated region
    $region30: #{matryoshka_mse_loss.1} parent=1 // pred_check
      _
    $region31: #{matryoshka_mse_loss.1} parent=1 // pred_check_branch
      %65 = sbr.rel (0) target = $region33
    $region32: #{matryoshka_mse_loss.1} parent=1 // pred_region
      _
    $region33: #{matryoshka_mse_loss.1} parent=1 // pred_fallthru
      _
    %66 = vsyncpa [#allocation3], 1
    %67 = vsyncpa [#allocation5], 1

</llo_original>
